<compile_context>
chip_gen: v7x
topology: tpu7x:2x2x1
jax: 0.10.0
libtpu: 0.0.40
codegen_flags: <defaults>
</compile_context>

<pallas_src>
import jax
import jax.numpy as jnp
from jax.experimental import pallas as pl
from jax.experimental.pallas import tpu as pltpu

# ----------------------------------------------------------------------------
# Problem / layout constants (match the PyTorch module).
# ----------------------------------------------------------------------------
IN_FEATURES = 4
H1 = 8
H2 = 8
OUT_FEATURES = 3
LANE = 128        # lane width of the packed parameter slab
OUT_PAD = 8       # output stored at 8 lanes (real logits in cols [:3])

# Packed parameter slab layout, shape (_P_ROWS, 128), all blocks 8-row aligned:
#   rows [ 0:  4)  W1^T  (in=4, h1)   cols [:H1]  real
#   rows [ 8: 16)  W2^T  (h1=8, h2)   cols [:H2]  real
#   rows [16: 24)  W3^T  (h2=8, out)  cols [:OUT] real
#   rows 24/25/26  b1 / b2 / b3 (zero-padded to 128 lanes)
_W1_OFF = 0
_W2_OFF = 8
_W3_OFF = 16
_B_OFF = 24
_P_ROWS = 32


def _round_up(a, m):
    return (a + m - 1) // m * m


# ----------------------------------------------------------------------------
# Kernel: whole 3-layer MLP fused (each contraction is a single MXU pass).
# ----------------------------------------------------------------------------
def _mlp_kernel(x_ref, p_ref, o_ref):
    x = x_ref[...]                                        # (tb, IN)
    w1 = p_ref[_W1_OFF:_W1_OFF + IN_FEATURES, :]          # (4, 128)  cols [:H1] real
    w2 = p_ref[_W2_OFF:_W2_OFF + H1, :]                   # (8, 128)  cols [:H2] real
    w3 = p_ref[_W3_OFF:_W3_OFF + H2, :]                   # (8, 128)  cols [:OUT] real
    b = p_ref[_B_OFF:_B_OFF + 3, :]                       # (3, 128)

    h1 = jnp.dot(x, w1, preferred_element_type=jnp.float32) + b[0:1, :]
    h1 = jnp.maximum(h1, 0.0)                             # padded lanes stay 0
    h2 = jnp.dot(h1[:, :H1], w2, preferred_element_type=jnp.float32) + b[1:2, :]
    h2 = jnp.maximum(h2, 0.0)
    logits = jnp.dot(h2[:, :H2], w3, preferred_element_type=jnp.float32) + b[2:3, :]
    o_ref[...] = logits[:, :OUT_PAD].astype(o_ref.dtype)  # narrow (tb, 8) store


# ----------------------------------------------------------------------------
# Wrapper
# ----------------------------------------------------------------------------
def pack_params(p):
    """Pack PyTorch-layout params (w: (out, in), b: (out,)) into one (32, 128) slab."""
    slab = jnp.zeros((_P_ROWS, LANE), jnp.float32)
    slab = slab.at[_W1_OFF:_W1_OFF + IN_FEATURES, :H1].set(p["w1"].T)
    slab = slab.at[_W2_OFF:_W2_OFF + H1, :H2].set(p["w2"].T)
    slab = slab.at[_W3_OFF:_W3_OFF + H2, :OUT_FEATURES].set(p["w3"].T)
    slab = slab.at[_B_OFF + 0, :H1].set(p["b1"])
    slab = slab.at[_B_OFF + 1, :H2].set(p["b2"])
    slab = slab.at[_B_OFF + 2, :OUT_FEATURES].set(p["b3"])
    return slab


def _choose_tiling(batch, max_tile_b):
    """Pick (tile rows, grid steps, padded batch): >=2 steps when possible
    (v7x megacore), tile capped at max_tile_b, padding kept to a few rows."""
    b8 = _round_up(max(batch, 1), 8)
    steps = max(1 if b8 <= 8 else 2, pl.cdiv(b8, max_tile_b))
    tb = _round_up(pl.cdiv(b8, steps), 8)
    steps = pl.cdiv(b8, tb)
    return tb, steps, tb * steps


def mlp_forward(x, packed_params, *, max_tile_b=2048):
    """x: (B, IN_FEATURES) f32. packed_params: (32, 128) f32 slab. Returns (B, 3)."""
    B = x.shape[0]
    tb, steps, b_pad = _choose_tiling(B, max_tile_b)
    if b_pad != B:
        x = jnp.pad(x, ((0, b_pad - B), (0, 0)))

    out_padded = pl.pallas_call(
        _mlp_kernel,
        out_shape=jax.ShapeDtypeStruct((b_pad, OUT_PAD), jnp.float32),
        grid=(steps,),
        in_specs=[
            pl.BlockSpec((tb, IN_FEATURES), lambda i: (i, 0)),   # batch-tiled x
            pl.BlockSpec((_P_ROWS, LANE), lambda i: (0, 0)),     # VMEM-resident params
        ],
        out_specs=pl.BlockSpec((tb, OUT_PAD), lambda i: (i, 0)),  # narrow output
        compiler_params=pltpu.CompilerParams(
            dimension_semantics=("parallel",),                    # both TCs on v7x
        ),
    )(x, packed_params)
    return out_padded[:B, :OUT_FEATURES]


# ----------------------------------------------------------------------------
# Reference / init
# ----------------------------------------------------------------------------
def init_params(key):
    """Deterministic synthetic init matching nn.Linear (w: (out, in), b: (out,))."""
    ks = jax.random.split(key, 6)

    def linear(kw, kb, fan_in, fan_out):
        bound = 1.0 / jnp.sqrt(fan_in)
        w = jax.random.uniform(kw, (fan_out, fan_in), jnp.float32, -bound, bound)
        b = jax.random.uniform(kb, (fan_out,), jnp.float32, -bound, bound)
        return w, b

    w1, b1 = linear(ks[0], ks[1], IN_FEATURES, H1)
    w2, b2 = linear(ks[2], ks[3], H1, H2)
    w3, b3 = linear(ks[4], ks[5], H2, OUT_FEATURES)
    return {"w1": w1, "b1": b1, "w2": w2, "b2": b2, "w3": w3, "b3": b3}


def mlp_reference(x, p):
    h1 = jnp.maximum(x @ p["w1"].T + p["b1"], 0.0)
    h2 = jnp.maximum(h1 @ p["w2"].T + p["b2"], 0.0)
    return h2 @ p["w3"].T + p["b3"]


if __name__ == "__main__":
    key = jax.random.PRNGKey(0)
    k_x, k_x2, k_x3, k_p = jax.random.split(key, 4)

    params = init_params(k_p)
    packed = pack_params(params)

    # Small batch (single grid step).
    x_small = jax.random.normal(k_x, (8, IN_FEATURES), jnp.float32)
    out_small = jax.block_until_ready(mlp_forward(x_small, packed))
    ref_small = mlp_reference(x_small, params)
    assert out_small.shape == (8, OUT_FEATURES)
    assert jnp.allclose(out_small, ref_small, atol=1e-5, rtol=1e-5)

    # Iris-sized odd batch exercises row padding + the 2-step grid split.
    x_iris = jax.random.normal(k_x3, (150, IN_FEATURES), jnp.float32)
    out_iris = jax.block_until_ready(mlp_forward(x_iris, packed))
    ref_iris = mlp_reference(x_iris, params)
    assert out_iris.shape == (150, OUT_FEATURES)
    assert jnp.allclose(out_iris, ref_iris, atol=1e-5, rtol=1e-5)

    # Larger batch exercises pipelining across 2 grid steps of 512 rows.
    x_large = jax.random.normal(k_x2, (1024, IN_FEATURES), jnp.float32)
    out_large = jax.block_until_ready(mlp_forward(x_large, packed))
    ref_large = mlp_reference(x_large, params)
    assert out_large.shape == (1024, OUT_FEATURES)
    assert jnp.allclose(out_large, ref_large, atol=1e-4, rtol=1e-4)

    print("KERNEL_OK")
</pallas_src>

<mosaic_0001>
module attributes {stable_mosaic.version = 11 : i64} {
  func.func @_mlp_kernel(%arg0: i32, %arg1: memref<8x4xf32, #tpu.memory_space<vmem>>, %arg2: memref<32x128xf32, #tpu.memory_space<vmem>>, %arg3: memref<8x8xf32, #tpu.memory_space<vmem>>) attributes {dimension_semantics = [#tpu.dimension_semantics<parallel>], iteration_bounds = array<i64: 1>, scalar_prefetch = 0 : i64, scratch_operands = 0 : i64, tpu.core_type = #tpu.core_type<tc>, window_params = [{transform_indices = @transform_0, window_bounds = array<i64: 8, 4>}, {pipeline_mode = #tpu.pipeline_mode<synchronous>, transform_indices = @transform_1, window_bounds = array<i64: 32, 128>}, {transform_indices = @transform_2, window_bounds = array<i64: 8, 8>}]} {
    %c0 = arith.constant 0 : index
    %c0_0 = arith.constant 0 : index
    %0 = vector.load %arg1[%c0, %c0_0] : memref<8x4xf32, #tpu.memory_space<vmem>>, vector<8x4xf32>
    %c0_1 = arith.constant 0 : index
    %c0_2 = arith.constant 0 : index
    %1 = vector.load %arg2[%c0_1, %c0_2] : memref<32x128xf32, #tpu.memory_space<vmem>>, vector<4x128xf32>
    %c8 = arith.constant 8 : index
    %c0_3 = arith.constant 0 : index
    %2 = vector.load %arg2[%c8, %c0_3] : memref<32x128xf32, #tpu.memory_space<vmem>>, vector<8x128xf32>
    %c16 = arith.constant 16 : index
    %c0_4 = arith.constant 0 : index
    %3 = vector.load %arg2[%c16, %c0_4] : memref<32x128xf32, #tpu.memory_space<vmem>>, vector<8x128xf32>
    %c24 = arith.constant 24 : index
    %c0_5 = arith.constant 0 : index
    %4 = vector.load %arg2[%c24, %c0_5] : memref<32x128xf32, #tpu.memory_space<vmem>>, vector<3x128xf32>
    %cst = arith.constant dense<0.000000e+00> : vector<8x128xf32>
    %5 = tpu.matmul %0, %1, %cst {dimension_numbers = #tpu.dot_dimension_numbers<[1], [0], [0], [1], [0, 0, 1, 1], [], []>} : vector<8x4xf32>, vector<4x128xf32>, vector<8x128xf32> -> vector<8x128xf32>
    %6 = vector.extract_strided_slice %4 {offsets = [0, 0], sizes = [1, 128], strides = [1, 1]} : vector<3x128xf32> to vector<1x128xf32>
    %7 = vector.broadcast %6 : vector<1x128xf32> to vector<8x128xf32>
    %8 = arith.addf %5, %7 : vector<8x128xf32>
    %cst_6 = arith.constant 0.000000e+00 : f32
    %9 = vector.broadcast %cst_6 : f32 to vector<8x128xf32>
    %10 = arith.maximumf %8, %9 : vector<8x128xf32>
    %11 = vector.extract_strided_slice %10 {offsets = [0, 0], sizes = [8, 8], strides = [1, 1]} : vector<8x128xf32> to vector<8x8xf32>
    %cst_7 = arith.constant dense<0.000000e+00> : vector<8x128xf32>
    %12 = tpu.matmul %11, %2, %cst_7 {dimension_numbers = #tpu.dot_dimension_numbers<[1], [0], [0], [1], [0, 0, 1, 1], [], []>} : vector<8x8xf32>, vector<8x128xf32>, vector<8x128xf32> -> vector<8x128xf32>
    %13 = vector.extract_strided_slice %4 {offsets = [1, 0], sizes = [1, 128], strides = [1, 1]} : vector<3x128xf32> to vector<1x128xf32>
    %14 = vector.broadcast %13 : vector<1x128xf32> to vector<8x128xf32>
    %15 = arith.addf %12, %14 : vector<8x128xf32>
    %cst_8 = arith.constant 0.000000e+00 : f32
    %16 = vector.broadcast %cst_8 : f32 to vector<8x128xf32>
    %17 = arith.maximumf %15, %16 : vector<8x128xf32>
    %18 = vector.extract_strided_slice %17 {offsets = [0, 0], sizes = [8, 8], strides = [1, 1]} : vector<8x128xf32> to vector<8x8xf32>
    %cst_9 = arith.constant dense<0.000000e+00> : vector<8x128xf32>
    %19 = tpu.matmul %18, %3, %cst_9 {dimension_numbers = #tpu.dot_dimension_numbers<[1], [0], [0], [1], [0, 0, 1, 1], [], []>} : vector<8x8xf32>, vector<8x128xf32>, vector<8x128xf32> -> vector<8x128xf32>
    %20 = vector.extract_strided_slice %4 {offsets = [2, 0], sizes = [1, 128], strides = [1, 1]} : vector<3x128xf32> to vector<1x128xf32>
    %21 = vector.broadcast %20 : vector<1x128xf32> to vector<8x128xf32>
    %22 = arith.addf %19, %21 : vector<8x128xf32>
    %23 = vector.extract_strided_slice %22 {offsets = [0, 0], sizes = [8, 8], strides = [1, 1]} : vector<8x128xf32> to vector<8x8xf32>
    %c0_10 = arith.constant 0 : index
    %c0_11 = arith.constant 0 : index
    %24 = vector.load %arg3[%c0_10, %c0_11] : memref<8x8xf32, #tpu.memory_space<vmem>>, vector<8x8xf32>
    tpu.vector_store %arg3[%c0_10, %c0_11], %23 {strides = array<i32>} : memref<8x8xf32, #tpu.memory_space<vmem>>, vector<8x8xf32>,
    return
  }
  func.func @transform_0(%arg0: i32) -> (i32, i32) {
    %c0_i32 = arith.constant 0 : i32
    %c0_i32_0 = arith.constant 0 : i32
    return %arg0, %c0_i32 : i32, i32
  }
  func.func @transform_1(%arg0: i32) -> (i32, i32) {
    %c0_i32 = arith.constant 0 : i32
    %c0_i32_0 = arith.constant 0 : i32
    %c0_i32_1 = arith.constant 0 : i32
    return %c0_i32, %c0_i32_0 : i32, i32
  }
  func.func @transform_2(%arg0: i32) -> (i32, i32) {
    %c0_i32 = arith.constant 0 : i32
    %c0_i32_0 = arith.constant 0 : i32
    return %arg0, %c0_i32 : i32, i32
  }
}

</mosaic_0001>

<llo_original>
// kernel: tpu_custom_call.1
$region0: #{tpu_custom_call.1}
  #allocation0 [shape = 'u32[]', space=smem, size = 0x4, offset = 0x4, fixed_abs, tag = 'smem constant byte address 0x4 - core index']
  #allocation1 [shape = 'u32[144,128]{1,0:T(1,128)}', space=vmem, size = 0x12000, scoped, tag = 'internal scratch']
  %s0 = inlined_call_operand.vmem [shape: f32[8,4], index: 0, kind: input, shape index: {}]
  %s1 = inlined_call_operand.hbm [shape: f32[32,128], index: 1, kind: input, shape index: {}]
  %s2 = inlined_call_operand.hbm [shape: f32[8,8], index: 2, kind: output, shape index: {}]
  %s3 = sld [smem:[#allocation0]]
  $region22: #{tpu_custom_call.1} parent=0
    _
  %s5 = ssub.s32 1, %s3
  %s6 = scalar_select 0, %s5, %s3
  $region1: #{tpu_custom_call.1} parent=0
    #allocation2 [shape = 'u8[16384]{0}', space=vmem, size = 0x4000, scoped, tag = 'input window, operand 1, single buffered']
    #allocation3 [shape = 's32[1]{0}', space=sflag, size = 0x4, scoped, tag = 'scoped memory for tpu_custom_call.1']
    #allocation4 [shape = 's32[1]{0}', space=sflag, size = 0x4, scoped, tag = 'scoped memory for tpu_custom_call.1']
    #allocation5 [shape = 'u8[4096]{0}', space=vmem, size = 0x1000, scoped, tag = 'output window, operand 0, single buffered']
    %7 = vsyncpa [#allocation3], 0
    %8 = vsyncpa [#allocation4], 0
    // Predicated region
    $region2: #{tpu_custom_call.1} parent=1 // pred_check
      _
    $region3: #{tpu_custom_call.1} parent=1 // pred_check_branch
      %10 = sbr.rel (0) target = $region5
    $region4: #{tpu_custom_call.1} parent=1 // pred_region
      _
    $region5: #{tpu_custom_call.1} parent=1 // pred_fallthru
      _
    // Predicated region
    $region6: #{tpu_custom_call.1} parent=1 // pred_check
      _
    $region7: #{tpu_custom_call.1} parent=1 // pred_check_branch
      %12 = sbr.rel (0) target = $region9
    $region8: #{tpu_custom_call.1} parent=1 // pred_region
      %s14 = ssub.s32 512, 512
      %15 = vsyncadd [#allocation3], %s14
      %s16 = sshll.u32 [#allocation2], 4
      %s17 = int_to_ptr.vmem [resolvable:$true] %s16
      %22 = dma.hbm_to_vmem [thread:$0]  %s1, 512, %s17, [#allocation3], 128, 128, 8
    $region9: #{tpu_custom_call.1} parent=1 // pred_fallthru
      _
    // Predicated region
    $region10: #{tpu_custom_call.1} parent=1 // pred_check
      _
    $region11: #{tpu_custom_call.1} parent=1 // pred_check_branch
      %24 = sbr.rel (0) target = $region13
    $region12: #{tpu_custom_call.1} parent=1 // pred_region
      %25 = dma.done [#allocation3], 512
    $region13: #{tpu_custom_call.1} parent=1 // pred_fallthru
      _
    %v26 = vld [vmem:[%s0] sm:$0xff]
    %v27 = vld [vmem:[#allocation2] sm:$0xf]
    %v28 = vld [vmem:[#allocation2 + $0x8] sm:$0xff]
    %v29 = vld [vmem:[#allocation2 + $0x10] sm:$0xff]
    %v30 = vld [vmem:[#allocation2 + $0x18] sm:$0x7]
    %v31 = vlaneseq
    %v32 = vshrl.u32 %v31, 7
    %v33 = vsub.s32 0, %v32
    %v34 = vrot.slane %v30, %v33
    %vm35 = vcmask 31744
    %v37 = vsel %vm35, %v26, 0
    %vm39 = vcmask 1043456
    %v41 = vsel %vm39, %v27, 0
    %43 = vmatprep.subr.mxu0 0.0
    %44 = vmatpush1.msra.mxu0 %v41
    %45 = vmatprep.subr.mxu0 0.0
    %46 = vmatpush1.msra.mxu0 0.0
    %47 = vmatprep.subr.mxu0 0.0
    %48 = vmatpush1.msra.mxu0 0.0
    %49 = vmatprep.subr.mxu0 0.0
    %50 = vmatpush1.msra.mxu0 0.0
    %51 = vmatprep.subr.mxu0 0.0
    %52 = vmatpush1.msra.mxu0 0.0
    %53 = vmatprep.subr.mxu0 0.0
    %54 = vmatpush1.msra.mxu0 0.0
    %55 = vmatprep.subr.mxu0 0.0
    %56 = vmatpush1.msra.mxu0 0.0
    %57 = vmatprep.subr.mxu0 0.0
    %58 = vmatpush1.msra.mxu0 0.0
    %59 = vmatprep.subr.mxu0 0.0
    %60 = vmatpush1.msra.mxu0 0.0
    %61 = vmatprep.subr.mxu0 0.0
    %62 = vmatpush1.msra.mxu0 0.0
    %63 = vmatprep.subr.mxu0 0.0
    %64 = vmatpush1.msra.mxu0 0.0
    %65 = vmatprep.subr.mxu0 0.0
    %66 = vmatpush1.msra.mxu0 0.0
    %67 = vmatprep.subr.mxu0 0.0
    %68 = vmatpush1.msra.mxu0 0.0
    %69 = vmatprep.subr.mxu0 0.0
    %70 = vmatpush1.msra.mxu0 0.0
    %71 = vmatprep.subr.mxu0 0.0
    %72 = vmatpush1.msra.mxu0 0.0
    %73 = vmatprep.subr.mxu0 0.0
    %74 = vmatpush1.msra.mxu0 0.0
    %75 = vmatprep.subr.mxu0 0.0
    %76 = vmatpush1.msra.mxu0 0.0
    %77 = vmatprep.subr.mxu0 0.0
    %78 = vmatpush1.msra.mxu0 0.0
    %79 = vmatprep.subr.mxu0 0.0
    %80 = vmatpush1.msra.mxu0 0.0
    %81 = vmatprep.subr.mxu0 0.0
    %82 = vmatpush1.msra.mxu0 0.0
    %83 = vmatprep.subr.mxu0 0.0
    %84 = vmatpush1.msra.mxu0 0.0
    %85 = vmatprep.subr.mxu0 0.0
    %86 = vmatpush1.msra.mxu0 0.0
    %87 = vmatprep.subr.mxu0 0.0
    %88 = vmatpush1.msra.mxu0 0.0
    %89 = vmatprep.subr.mxu0 0.0
    %90 = vmatpush1.msra.mxu0 0.0
    %91 = vmatprep.subr.mxu0 0.0
    %92 = vmatpush1.msra.mxu0 0.0
    %93 = vmatprep.subr.mxu0 0.0
    %94 = vmatpush1.msra.mxu0 0.0
    %95 = vmatprep.subr.mxu0 0.0
    %96 = vmatpush1.msra.mxu0 0.0
    %97 = vmatprep.subr.mxu0 0.0
    %98 = vmatpush1.msra.mxu0 0.0
    %99 = vmatprep.subr.mxu0 0.0
    %100 = vmatpush1.msra.mxu0 0.0
    %101 = vmatprep.subr.mxu0 0.0
    %102 = vmatpush1.msra.mxu0 0.0
    %103 = vmatprep.subr.mxu0 0.0
    %104 = vmatpush1.msra.mxu0 0.0
    %105 = vmatprep.subr.mxu0 0.0
    %106 = vmatpush1.msra.mxu0 0.0
    %107 = vmatprep.mubr.f32.mxu0 0.0
    %108 = vmatmul.mubr.f32.gmra.mrb[0].mxu0 %v37
    %v109 = vpop.f32.mrb[0].mxu0
    %v110 = vadd.f32 %v34, %v109
    %v111 = vpop.f32.mrb[0].mxu0
    %112 = vdwg.mxu0
    %v113 = vmax.f32 %v110, 0.0
    %v114 = vlaneseq
    %v115 = vshrl.u32 %v114, 7
    %v116 = vsub.s32 1, %v115
    %v117 = vrot.slane %v30, %v116
    %vm118 = vcmask 64512
    %v120 = vsel %vm118, %v113, 0
    %122 = vmatprep.subr.mxu0 0.0
    %123 = vmatpush1.msra.mxu0 %v28
    %124 = vmatprep.subr.mxu0 0.0
    %125 = vmatpush1.msra.mxu0 0.0
    %126 = vmatprep.subr.mxu0 0.0
    %127 = vmatpush1.msra.mxu0 0.0
    %128 = vmatprep.subr.mxu0 0.0
    %129 = vmatpush1.msra.mxu0 0.0
    %130 = vmatprep.subr.mxu0 0.0
    %131 = vmatpush1.msra.mxu0 0.0
    %132 = vmatprep.subr.mxu0 0.0
    %133 = vmatpush1.msra.mxu0 0.0
    %134 = vmatprep.subr.mxu0 0.0
    %135 = vmatpush1.msra.mxu0 0.0
    %136 = vmatprep.subr.mxu0 0.0
    %137 = vmatpush1.msra.mxu0 0.0
    %138 = vmatprep.subr.mxu0 0.0
    %139 = vmatpush1.msra.mxu0 0.0
    %140 = vmatprep.subr.mxu0 0.0
    %141 = vmatpush1.msra.mxu0 0.0
    %142 = vmatprep.subr.mxu0 0.0
    %143 = vmatpush1.msra.mxu0 0.0
    %144 = vmatprep.subr.mxu0 0.0
    %145 = vmatpush1.msra.mxu0 0.0
    %146 = vmatprep.subr.mxu0 0.0
    %147 = vmatpush1.msra.mxu0 0.0
    %148 = vmatprep.subr.mxu0 0.0
    %149 = vmatpush1.msra.mxu0 0.0
    %150 = vmatprep.subr.mxu0 0.0
    %151 = vmatpush1.msra.mxu0 0.0
    %152 = vmatprep.subr.mxu0 0.0
    %153 = vmatpush1.msra.mxu0 0.0
    %154 = vmatprep.subr.mxu0 0.0
    %155 = vmatpush1.msra.mxu0 0.0
    %156 = vmatprep.subr.mxu0 0.0
    %157 = vmatpush1.msra.mxu0 0.0
    %158 = vmatprep.subr.mxu0 0.0
    %159 = vmatpush1.msra.mxu0 0.0
    %160 = vmatprep.subr.mxu0 0.0
    %161 = vmatpush1.msra.mxu0 0.0
    %162 = vmatprep.subr.mxu0 0.0
    %163 = vmatpush1.msra.mxu0 0.0
    %164 = vmatprep.subr.mxu0 0.0
    %165 = vmatpush1.msra.mxu0 0.0
    %166 = vmatprep.subr.mxu0 0.0
    %167 = vmatpush1.msra.mxu0 0.0
    %168 = vmatprep.subr.mxu0 0.0
    %169 = vmatpush1.msra.mxu0 0.0
    %170 = vmatprep.subr.mxu0 0.0
    %171 = vmatpush1.msra.mxu0 0.0
    %172 = vmatprep.subr.mxu0 0.0
    %173 = vmatpush1.msra.mxu0 0.0
    %174 = vmatprep.subr.mxu0 0.0
    %175 = vmatpush1.msra.mxu0 0.0
    %176 = vmatprep.subr.mxu0 0.0
    %177 = vmatpush1.msra.mxu0 0.0
    %178 = vmatprep.subr.mxu0 0.0
    %179 = vmatpush1.msra.mxu0 0.0
    %180 = vmatprep.subr.mxu0 0.0
    %181 = vmatpush1.msra.mxu0 0.0
    %182 = vmatprep.subr.mxu0 0.0
    %183 = vmatpush1.msra.mxu0 0.0
    %184 = vmatprep.subr.mxu0 0.0
    %185 = vmatpush1.msra.mxu0 0.0
    %186 = vmatprep.mubr.f32.mxu0 0.0
    %187 = vmatmul.mubr.f32.gmra.mrb[0].mxu0 %v120
    %v188 = vpop.f32.mrb[0].mxu0
    %v189 = vadd.f32 %v117, %v188
    %v190 = vpop.f32.mrb[0].mxu0
    %191 = vdwg.mxu0
    %v192 = vmax.f32 %v189, 0.0
    %v193 = vlaneseq
    %v194 = vshrl.u32 %v193, 7
    %v195 = vsub.s32 2, %v194
    %v196 = vrot.slane %v30, %v195
    %v198 = vsel %vm118, %v192, 0
    %200 = vmatprep.subr.mxu0 0.0
    %201 = vmatpush1.msra.mxu0 %v29
    %202 = vmatprep.subr.mxu0 0.0
    %203 = vmatpush1.msra.mxu0 0.0
    %204 = vmatprep.subr.mxu0 0.0
    %205 = vmatpush1.msra.mxu0 0.0
    %206 = vmatprep.subr.mxu0 0.0
    %207 = vmatpush1.msra.mxu0 0.0
    %208 = vmatprep.subr.mxu0 0.0
    %209 = vmatpush1.msra.mxu0 0.0
    %210 = vmatprep.subr.mxu0 0.0
    %211 = vmatpush1.msra.mxu0 0.0
    %212 = vmatprep.subr.mxu0 0.0
    %213 = vmatpush1.msra.mxu0 0.0
    %214 = vmatprep.subr.mxu0 0.0
    %215 = vmatpush1.msra.mxu0 0.0
    %216 = vmatprep.subr.mxu0 0.0
    %217 = vmatpush1.msra.mxu0 0.0
    %218 = vmatprep.subr.mxu0 0.0
    %219 = vmatpush1.msra.mxu0 0.0
    %220 = vmatprep.subr.mxu0 0.0
    %221 = vmatpush1.msra.mxu0 0.0
    %222 = vmatprep.subr.mxu0 0.0
    %223 = vmatpush1.msra.mxu0 0.0
    %224 = vmatprep.subr.mxu0 0.0
    %225 = vmatpush1.msra.mxu0 0.0
    %226 = vmatprep.subr.mxu0 0.0
    %227 = vmatpush1.msra.mxu0 0.0
    %228 = vmatprep.subr.mxu0 0.0
    %229 = vmatpush1.msra.mxu0 0.0
    %230 = vmatprep.subr.mxu0 0.0
    %231 = vmatpush1.msra.mxu0 0.0
    %232 = vmatprep.subr.mxu0 0.0
    %233 = vmatpush1.msra.mxu0 0.0
    %234 = vmatprep.subr.mxu0 0.0
    %235 = vmatpush1.msra.mxu0 0.0
    %236 = vmatprep.subr.mxu0 0.0
    %237 = vmatpush1.msra.mxu0 0.0
    %238 = vmatprep.subr.mxu0 0.0
    %239 = vmatpush1.msra.mxu0 0.0
    %240 = vmatprep.subr.mxu0 0.0
    %241 = vmatpush1.msra.mxu0 0.0
    %242 = vmatprep.subr.mxu0 0.0
    %243 = vmatpush1.msra.mxu0 0.0
    %244 = vmatprep.subr.mxu0 0.0
    %245 = vmatpush1.msra.mxu0 0.0
    %246 = vmatprep.subr.mxu0 0.0
    %247 = vmatpush1.msra.mxu0 0.0
    %248 = vmatprep.subr.mxu0 0.0
    %249 = vmatpush1.msra.mxu0 0.0
    %250 = vmatprep.subr.mxu0 0.0
    %251 = vmatpush1.msra.mxu0 0.0
    %252 = vmatprep.subr.mxu0 0.0
    %253 = vmatpush1.msra.mxu0 0.0
    %254 = vmatprep.subr.mxu0 0.0
    %255 = vmatpush1.msra.mxu0 0.0
    %256 = vmatprep.subr.mxu0 0.0
    %257 = vmatpush1.msra.mxu0 0.0
    %258 = vmatprep.subr.mxu0 0.0
    %259 = vmatpush1.msra.mxu0 0.0
    %260 = vmatprep.subr.mxu0 0.0
    %261 = vmatpush1.msra.mxu0 0.0
    %262 = vmatprep.subr.mxu0 0.0
    %263 = vmatpush1.msra.mxu0 0.0
    %264 = vmatprep.mubr.f32.mxu0 0.0
    %265 = vmatmul.mubr.f32.gmra.mrb[0].mxu0 %v198
    %v266 = vpop.f32.mrb[0].mxu0
    %v267 = vadd.f32 %v196, %v266
    %v268 = vpop.f32.mrb[0].mxu0
    %269 = vdwg.mxu0
    %270 = vst.msk [vmem:[#allocation5] sm:$0xff] %vm118, %v267
    // Predicated region
    $region14: #{tpu_custom_call.1} parent=1 // pred_check
      _
    $region15: #{tpu_custom_call.1} parent=1 // pred_check_branch
      %272 = sbr.rel (0) target = $region17
    $region16: #{tpu_custom_call.1} parent=1 // pred_region
      %s274 = ssub.s32 128, 128
      %275 = vsyncadd [#allocation4], %s274
      %s277 = sshll.u32 [#allocation5], 4
      %s278 = int_to_ptr.vmem [resolvable:$true] %s277
      %280 = dma.vmem_to_hbm [thread:$0]  %s278, 128, %s2, [#allocation4]
    $region17: #{tpu_custom_call.1} parent=1 // pred_fallthru
      _
    // Predicated region
    $region18: #{tpu_custom_call.1} parent=1 // pred_check
      _
    $region19: #{tpu_custom_call.1} parent=1 // pred_check_branch
      %282 = sbr.rel (0) target = $region21
    $region20: #{tpu_custom_call.1} parent=1 // pred_region
      %283 = dma.done [#allocation4], 128
    $region21: #{tpu_custom_call.1} parent=1 // pred_fallthru
      _
    %284 = vsyncpa [#allocation3], 1
    %285 = vsyncpa [#allocation4], 1

</llo_original>
